<compile_context>
chip_gen: v5e
topology: v5e:2x2
jax: 0.10.0
libtpu: 0.0.40
codegen_flags: <defaults>
</compile_context>

<pallas_src>
import functools

import jax
import jax.numpy as jnp
from jax import lax
from jax.experimental import pallas as pl
from jax.experimental.pallas import tpu as pltpu


def _gram_kernel(a_ref, e_ref, ga_ref, ge_ref, gx_ref):
    # a_ref / e_ref: (N, TD) column blocks of A / E.
    # ga/ge/gx_ref : (N, N) accumulators, resident across the reduction grid axis.
    i = pl.program_id(0)

    @pl.when(i == 0)
    def _():
        ga_ref[...] = jnp.zeros_like(ga_ref)
        ge_ref[...] = jnp.zeros_like(ge_ref)
        gx_ref[...] = jnp.zeros_like(gx_ref)

    a = a_ref[...]
    e = e_ref[...]
    dn = (((1,), (1,)), ((), ()))  # contract the lane (column) axis of both operands
    ga_ref[...] += lax.dot_general(a, a, dn, preferred_element_type=jnp.float32)
    ge_ref[...] += lax.dot_general(e, e, dn, preferred_element_type=jnp.float32)
    gx_ref[...] += lax.dot_general(a, e, dn, preferred_element_type=jnp.float32)


def _cos_kernel(ga_ref, ge_ref, gx_ref, a_ref, e_ref, out_ref, *, d_valid, td):
    # ga/ge/gx_ref: full (N, N) Grams (constant block index -> DMA'd once).
    # a_ref/e_ref : (N, TD) column blocks of (zero-padded) A / E.
    # out_ref     : (1, 8, 128) lane-dense per-block partial (broadcast scalar).
    a = a_ref[...]
    e = e_ref[...]
    ga = ga_ref[...]
    ge = ge_ref[...]
    gx = gx_ref[...]

    # ss_i = a_i^T GA a_i, etc. -- one elementwise pass + sublane reduction.
    ss = jnp.sum(a * jnp.dot(ga, a, preferred_element_type=jnp.float32),
                 axis=0, keepdims=True)                       # (1, TD)
    ee = jnp.sum(e * jnp.dot(ge, e, preferred_element_type=jnp.float32),
                 axis=0, keepdims=True)                       # (1, TD)
    se = jnp.sum(a * jnp.dot(gx, e, preferred_element_type=jnp.float32),
                 axis=0, keepdims=True)                       # (1, TD)

    # cos_i; a genuinely zero-norm valid row yields inf/nan, matching the
    # reference's divide-by-zero.
    cos = se * lax.rsqrt(ss) * lax.rsqrt(ee)                  # (1, TD)

    # Mask zero-padded columns (their ss/ee are 0 -> rsqrt(0)=inf -> nan) out of
    # the sum; jnp.where does not propagate the unselected nan branch.
    col = lax.broadcasted_iota(jnp.int32, cos.shape, 1) + pl.program_id(0) * td
    contrib = jnp.where(col < d_valid, 1.0 - cos, 0.0)        # per-column (1 - cos_i)
    partial = jnp.sum(contrib)

    out_ref[...] = jnp.full(out_ref.shape, partial, dtype=out_ref.dtype)


def _pick_block_cols(n_rows, d_cols):
    """Lane-axis block width TD (multiple of 128).

    Per-step working set ~ 8 * N * TD * 4 bytes (A/E blocks double-buffered plus
    the (N, TD) products of the cosine pass); keep well under the 16 MiB default
    scoped VMEM of v5e, the tightest generation."""
    budget = 8 * 1024 * 1024
    max_td = max(128, budget // (32 * max(n_rows, 8)))
    td = 128
    for cand in (2048, 1024, 512, 256, 128):
        if cand <= max_td:
            td = cand
            break
    # Do not over-pad small D.
    d_128 = ((d_cols + 127) // 128) * 128
    return min(td, d_128)


def channel_loss(activations, ema_activations, batch_size, world_size=1):
    """Pallas implementation of ChannelLoss.forward (single-process path)."""
    assert activations.shape == ema_activations.shape
    assert world_size == 1, "multi-process gather not implemented"
    N = batch_size * world_size
    a = activations.reshape(N, -1).astype(jnp.float32)
    e = ema_activations.reshape(N, -1).astype(jnp.float32)
    D = a.shape[1]

    td = _pick_block_cols(N, D)
    Dp = ((D + td - 1) // td) * td
    if Dp != D:
        a = jnp.pad(a, ((0, 0), (0, Dp - D)))
        e = jnp.pad(e, ((0, 0), (0, Dp - D)))
    g = Dp // td

    # Pass 1: the three tiny (N, N) Grams, accumulated over column blocks of D.
    ga, ge, gx = pl.pallas_call(
        _gram_kernel,
        out_shape=(jax.ShapeDtypeStruct((N, N), jnp.float32),) * 3,
        grid=(g,),
        in_specs=[
            pl.BlockSpec((N, td), lambda i: (0, i)),
            pl.BlockSpec((N, td), lambda i: (0, i)),
        ],
        out_specs=(pl.BlockSpec((N, N), lambda i: (0, 0)),) * 3,
        compiler_params=pltpu.CompilerParams(
            dimension_semantics=("arbitrary",),   # reduction axis
        ),
    )(a, e)

    # Pass 2: per-column cosines from the Grams; independent column blocks.
    partials = pl.pallas_call(
        functools.partial(_cos_kernel, d_valid=D, td=td),
        out_shape=jax.ShapeDtypeStruct((g, 8, 128), jnp.float32),
        grid=(g,),
        in_specs=[
            pl.BlockSpec((N, N), lambda i: (0, 0)),
            pl.BlockSpec((N, N), lambda i: (0, 0)),
            pl.BlockSpec((N, N), lambda i: (0, 0)),
            pl.BlockSpec((N, td), lambda i: (0, i)),
            pl.BlockSpec((N, td), lambda i: (0, i)),
        ],
        out_specs=pl.BlockSpec((1, 8, 128), lambda i: (i, 0, 0)),
        compiler_params=pltpu.CompilerParams(
            dimension_semantics=("parallel",),    # megacore sharding on v7x
        ),
    )(ga, ge, gx, a, e)

    # loss = sum_i (2 - 2*cos_i) / N = 2 * sum_i (1 - cos_i) / N.
    # Summing per-column (1 - cos_i) avoids subtracting two O(D) totals.
    one_minus_cos_sum = jnp.sum(partials[:, 0, 0])
    return 2.0 * one_minus_cos_sum / N


def _reference(activations, ema_activations, batch_size, world_size=1):
    N = batch_size * world_size
    a = activations.reshape(N, -1).astype(jnp.float32)
    e = ema_activations.reshape(N, -1).astype(jnp.float32)
    sim = a.T @ a
    sim = sim / jnp.linalg.norm(sim, axis=1, keepdims=True)
    esim = e.T @ e
    esim = esim / jnp.linalg.norm(esim, axis=1, keepdims=True)
    return jnp.sum((sim - esim) ** 2 / N)


if __name__ == "__main__":
    # Small shapes consistent with an NCHW feature map: (B=2, C=4, H=16, W=16).
    batch_size, world_size = 2, 1
    key = jax.random.PRNGKey(0)
    k1, k2 = jax.random.split(key)
    activations = jax.random.normal(k1, (batch_size, 4, 16, 16), dtype=jnp.float32)
    ema_activations = jax.random.normal(k2, (batch_size, 4, 16, 16), dtype=jnp.float32)

    loss = channel_loss(activations, ema_activations, batch_size, world_size)
    loss = jax.block_until_ready(loss)

    ref = _reference(activations, ema_activations, batch_size, world_size)
    assert jnp.allclose(loss, ref, rtol=1e-3, atol=1e-4), (loss, ref)

    print("KERNEL_OK")
</pallas_src>

<mosaic_0001>
module attributes {stable_mosaic.version = 11 : i64} {
  func.func @_gram_kernel(%arg0: i32, %arg1: memref<2x1024xf32, #tpu.memory_space<vmem>>, %arg2: memref<2x1024xf32, #tpu.memory_space<vmem>>, %arg3: memref<2x2xf32, #tpu.memory_space<vmem>>, %arg4: memref<2x2xf32, #tpu.memory_space<vmem>>, %arg5: memref<2x2xf32, #tpu.memory_space<vmem>>) attributes {dimension_semantics = [#tpu.dimension_semantics<arbitrary>], iteration_bounds = array<i64: 1>, scalar_prefetch = 0 : i64, scratch_operands = 0 : i64, tpu.core_type = #tpu.core_type<tc>, window_params = [{transform_indices = @transform_0, window_bounds = array<i64: 2, 1024>}, {transform_indices = @transform_1, window_bounds = array<i64: 2, 1024>}, {pipeline_mode = #tpu.pipeline_mode<synchronous>, transform_indices = @transform_2, window_bounds = array<i64: 2, 2>}, {pipeline_mode = #tpu.pipeline_mode<synchronous>, transform_indices = @transform_3, window_bounds = array<i64: 2, 2>}, {pipeline_mode = #tpu.pipeline_mode<synchronous>, transform_indices = @transform_4, window_bounds = array<i64: 2, 2>}]} {
    %c0_i32 = arith.constant 0 : i32
    %0 = arith.cmpi eq, %arg0, %c0_i32 : i32
    %1 = arith.extui %0 : i1 to i32
    %c0_i32_0 = arith.constant 0 : i32
    %2 = arith.cmpi ne, %1, %c0_i32_0 : i32
    scf.if %2 {
      %cst_18 = arith.constant 0.000000e+00 : f32
      %17 = vector.broadcast %cst_18 : f32 to vector<2x2xf32>
      %c0_19 = arith.constant 0 : index
      %c0_20 = arith.constant 0 : index
      %18 = vector.load %arg3[%c0_19, %c0_20] : memref<2x2xf32, #tpu.memory_space<vmem>>, vector<2x2xf32>
      tpu.vector_store %arg3[%c0_19, %c0_20], %17 {strides = array<i32>} : memref<2x2xf32, #tpu.memory_space<vmem>>, vector<2x2xf32>,
      %cst_21 = arith.constant 0.000000e+00 : f32
      %19 = vector.broadcast %cst_21 : f32 to vector<2x2xf32>
      %c0_22 = arith.constant 0 : index
      %c0_23 = arith.constant 0 : index
      %20 = vector.load %arg4[%c0_22, %c0_23] : memref<2x2xf32, #tpu.memory_space<vmem>>, vector<2x2xf32>
      tpu.vector_store %arg4[%c0_22, %c0_23], %19 {strides = array<i32>} : memref<2x2xf32, #tpu.memory_space<vmem>>, vector<2x2xf32>,
      %cst_24 = arith.constant 0.000000e+00 : f32
      %21 = vector.broadcast %cst_24 : f32 to vector<2x2xf32>
      %c0_25 = arith.constant 0 : index
      %c0_26 = arith.constant 0 : index
      %22 = vector.load %arg5[%c0_25, %c0_26] : memref<2x2xf32, #tpu.memory_space<vmem>>, vector<2x2xf32>
      tpu.vector_store %arg5[%c0_25, %c0_26], %21 {strides = array<i32>} : memref<2x2xf32, #tpu.memory_space<vmem>>, vector<2x2xf32>,
    } else {
    }
    %c0 = arith.constant 0 : index
    %c0_1 = arith.constant 0 : index
    %3 = vector.load %arg1[%c0, %c0_1] : memref<2x1024xf32, #tpu.memory_space<vmem>>, vector<2x1024xf32>
    %c0_2 = arith.constant 0 : index
    %c0_3 = arith.constant 0 : index
    %4 = vector.load %arg2[%c0_2, %c0_3] : memref<2x1024xf32, #tpu.memory_space<vmem>>, vector<2x1024xf32>
    %c0_4 = arith.constant 0 : index
    %c0_5 = arith.constant 0 : index
    %5 = vector.load %arg3[%c0_4, %c0_5] : memref<2x2xf32, #tpu.memory_space<vmem>>, vector<2x2xf32>
    %cst = arith.constant dense<0.000000e+00> : vector<2x2xf32>
    %6 = tpu.matmul %3, %3, %cst {dimension_numbers = #tpu.dot_dimension_numbers<[1], [1], [0], [0], [0, 0, 1, 0], [], []>} : vector<2x1024xf32>, vector<2x1024xf32>, vector<2x2xf32> -> vector<2x2xf32>
    %7 = arith.addf %5, %6 : vector<2x2xf32>
    %c0_6 = arith.constant 0 : index
    %c0_7 = arith.constant 0 : index
    %8 = vector.load %arg3[%c0_6, %c0_7] : memref<2x2xf32, #tpu.memory_space<vmem>>, vector<2x2xf32>
    tpu.vector_store %arg3[%c0_6, %c0_7], %7 {strides = array<i32>} : memref<2x2xf32, #tpu.memory_space<vmem>>, vector<2x2xf32>,
    %c0_8 = arith.constant 0 : index
    %c0_9 = arith.constant 0 : index
    %9 = vector.load %arg4[%c0_8, %c0_9] : memref<2x2xf32, #tpu.memory_space<vmem>>, vector<2x2xf32>
    %cst_10 = arith.constant dense<0.000000e+00> : vector<2x2xf32>
    %10 = tpu.matmul %4, %4, %cst_10 {dimension_numbers = #tpu.dot_dimension_numbers<[1], [1], [0], [0], [0, 0, 1, 0], [], []>} : vector<2x1024xf32>, vector<2x1024xf32>, vector<2x2xf32> -> vector<2x2xf32>
    %11 = arith.addf %9, %10 : vector<2x2xf32>
    %c0_11 = arith.constant 0 : index
    %c0_12 = arith.constant 0 : index
    %12 = vector.load %arg4[%c0_11, %c0_12] : memref<2x2xf32, #tpu.memory_space<vmem>>, vector<2x2xf32>
    tpu.vector_store %arg4[%c0_11, %c0_12], %11 {strides = array<i32>} : memref<2x2xf32, #tpu.memory_space<vmem>>, vector<2x2xf32>,
    %c0_13 = arith.constant 0 : index
    %c0_14 = arith.constant 0 : index
    %13 = vector.load %arg5[%c0_13, %c0_14] : memref<2x2xf32, #tpu.memory_space<vmem>>, vector<2x2xf32>
    %cst_15 = arith.constant dense<0.000000e+00> : vector<2x2xf32>
    %14 = tpu.matmul %3, %4, %cst_15 {dimension_numbers = #tpu.dot_dimension_numbers<[1], [1], [0], [0], [0, 0, 1, 0], [], []>} : vector<2x1024xf32>, vector<2x1024xf32>, vector<2x2xf32> -> vector<2x2xf32>
    %15 = arith.addf %13, %14 : vector<2x2xf32>
    %c0_16 = arith.constant 0 : index
    %c0_17 = arith.constant 0 : index
    %16 = vector.load %arg5[%c0_16, %c0_17] : memref<2x2xf32, #tpu.memory_space<vmem>>, vector<2x2xf32>
    tpu.vector_store %arg5[%c0_16, %c0_17], %15 {strides = array<i32>} : memref<2x2xf32, #tpu.memory_space<vmem>>, vector<2x2xf32>,
    return
  }
  func.func @transform_0(%arg0: i32) -> (i32, i32) {
    %c0_i32 = arith.constant 0 : i32
    %c0_i32_0 = arith.constant 0 : i32
    return %c0_i32, %arg0 : i32, i32
  }
  func.func @transform_1(%arg0: i32) -> (i32, i32) {
    %c0_i32 = arith.constant 0 : i32
    %c0_i32_0 = arith.constant 0 : i32
    return %c0_i32, %arg0 : i32, i32
  }
  func.func @transform_2(%arg0: i32) -> (i32, i32) {
    %c0_i32 = arith.constant 0 : i32
    %c0_i32_0 = arith.constant 0 : i32
    %c0_i32_1 = arith.constant 0 : i32
    return %c0_i32, %c0_i32_0 : i32, i32
  }
  func.func @transform_3(%arg0: i32) -> (i32, i32) {
    %c0_i32 = arith.constant 0 : i32
    %c0_i32_0 = arith.constant 0 : i32
    %c0_i32_1 = arith.constant 0 : i32
    return %c0_i32, %c0_i32_0 : i32, i32
  }
  func.func @transform_4(%arg0: i32) -> (i32, i32) {
    %c0_i32 = arith.constant 0 : i32
    %c0_i32_0 = arith.constant 0 : i32
    %c0_i32_1 = arith.constant 0 : i32
    return %c0_i32, %c0_i32_0 : i32, i32
  }
}

</mosaic_0001>

<llo_original>
// kernel: tpu_custom_call.1
$region0: #{tpu_custom_call.1}
  #allocation0 [shape = 'u32[]', space=smem, size = 0x4, offset = 0x4, fixed_abs, tag = 'smem constant byte address 0x4 - core index']
  #allocation1 [shape = 'u32[72,128]{1,0:T(1,128)}', space=vmem, size = 0x9000, scoped, tag = 'internal scratch']
  %s0 = inlined_call_operand.hbm [shape: f32[2,1024], index: 0, kind: input, shape index: {}]
  %s1 = inlined_call_operand.hbm [shape: f32[2,1024], index: 1, kind: input, shape index: {}]
  %s2 = inlined_call_operand.hbm [shape: f32[2,2], index: 2, kind: output, shape index: {0}]
  %s3 = inlined_call_operand.hbm [shape: f32[2,2], index: 3, kind: output, shape index: {1}]
  %s4 = inlined_call_operand.hbm [shape: f32[2,2], index: 4, kind: output, shape index: {2}]
  %5 = xla_tuple %s2, %s3, %s4
  %s6 = sld [smem:[#allocation0]]
  $region46: #{tpu_custom_call.1} parent=0
    _
  %s8 = ssub.s32 1, %s6
  %s9 = scalar_select 0, %s8, %s6
  $region1: #{tpu_custom_call.1} parent=0
    #allocation2 [shape = 'u8[8192]{0}', space=vmem, size = 0x2000, scoped, tag = 'input window, operand 0, single buffered']
    #allocation3 [shape = 's32[1]{0}', space=sflag, size = 0x4, scoped, tag = 'scoped memory for tpu_custom_call.1']
    #allocation4 [shape = 's32[1]{0}', space=sflag, size = 0x4, scoped, tag = 'scoped memory for tpu_custom_call.1']
    #allocation5 [shape = 'u8[8192]{0}', space=vmem, size = 0x2000, scoped, tag = 'input window, operand 1, single buffered']
    #allocation6 [shape = 's32[1]{0}', space=sflag, size = 0x4, scoped, tag = 'scoped memory for tpu_custom_call.1']
    #allocation7 [shape = 'u8[1024]{0}', space=vmem, size = 0x400, scoped, tag = 'output window, operand 0, single buffered']
    #allocation8 [shape = 'u8[1024]{0}', space=vmem, size = 0x400, scoped, tag = 'output window, operand 1, single buffered']
    #allocation9 [shape = 's32[1]{0}', space=sflag, size = 0x4, scoped, tag = 'scoped memory for tpu_custom_call.1']
    #allocation10 [shape = 'u8[1024]{0}', space=vmem, size = 0x400, scoped, tag = 'output window, operand 2, single buffered']
    %10 = vsyncpa [#allocation3], 0
    %11 = vsyncpa [#allocation6], 0
    %12 = vsyncpa [#allocation4], 0
    %13 = vsyncpa [#allocation9], 0
    // Predicated region
    $region2: #{tpu_custom_call.1} parent=1 // pred_check
      _
    $region3: #{tpu_custom_call.1} parent=1 // pred_check_branch
      %15 = sbr.rel (0) target = $region5
    $region4: #{tpu_custom_call.1} parent=1 // pred_region
      %17 = vsyncadd [#allocation3], 0
      %s19 = sshll.u32 %s0, 4
      %s20 = int_to_ptr.hbm [resolvable:$true] %s19
      %s21 = sshll.u32 [#allocation2], 4
      %s22 = int_to_ptr.vmem [resolvable:$true] %s21
      %24 = dma.hbm_to_vmem [thread:$0]  %s20, 256, %s22, [#allocation3]
    $region5: #{tpu_custom_call.1} parent=1 // pred_fallthru
      _
    // Predicated region
    $region6: #{tpu_custom_call.1} parent=1 // pred_check
      _
    $region7: #{tpu_custom_call.1} parent=1 // pred_check_branch
      %26 = sbr.rel (0) target = $region9
    $region8: #{tpu_custom_call.1} parent=1 // pred_region
      %28 = vsyncadd [#allocation6], 0
      %s30 = sshll.u32 %s1, 4
      %s31 = int_to_ptr.hbm [resolvable:$true] %s30
      %s32 = sshll.u32 [#allocation5], 4
      %s33 = int_to_ptr.vmem [resolvable:$true] %s32
      %35 = dma.hbm_to_vmem [thread:$0]  %s31, 256, %s33, [#allocation6]
    $region9: #{tpu_custom_call.1} parent=1 // pred_fallthru
      _
    // Predicated region
    $region10: #{tpu_custom_call.1} parent=1 // pred_check
      _
    $region11: #{tpu_custom_call.1} parent=1 // pred_check_branch
      %37 = sbr.rel (0) target = $region13
    $region12: #{tpu_custom_call.1} parent=1 // pred_region
      %39 = dma.done [#allocation3], 256
    $region13: #{tpu_custom_call.1} parent=1 // pred_fallthru
      _
    // Predicated region
    $region14: #{tpu_custom_call.1} parent=1 // pred_check
      _
    $region15: #{tpu_custom_call.1} parent=1 // pred_check_branch
      %41 = sbr.rel (0) target = $region17
    $region16: #{tpu_custom_call.1} parent=1 // pred_region
      %43 = dma.done [#allocation6], 256
    $region17: #{tpu_custom_call.1} parent=1 // pred_fallthru
      _
    %p44 = scmp.eq.s32.totalorder 0, 0
    // Predicated region
    $region18: #{tpu_custom_call.1} parent=1 // pred_check
      %p45 = pneg %p44
    $region19: #{tpu_custom_call.1} parent=1 // pred_check_branch
      %47 = sbr.rel (%p45) target = $region21
    $region20: #{tpu_custom_call.1} parent=1 // pred_region
      %vm48 = vcmask 9216
      %49 = vst.msk [vmem:[#allocation7] sm:$0x3] %vm48, 0.0
      %50 = vst.msk [vmem:[#allocation8] sm:$0x3] %vm48, 0.0
      %51 = vst.msk [vmem:[#allocation10] sm:$0x3] %vm48, 0.0
    $region21: #{tpu_custom_call.1} parent=1 // pred_fallthru
      _
    %v52 = vld [vmem:[#allocation2] sm:$0xff]
    %v53 = vld [vmem:[#allocation2 + $0x8] sm:$0xff]
    %v54 = vld [vmem:[#allocation5] sm:$0xff]
    %v55 = vld [vmem:[#allocation5 + $0x8] sm:$0xff]
    %v56 = vld [vmem:[#allocation7] sm:$0x3]
    %59 = vst [vmem:[#allocation1] ss:$4 sm:$0xff] %v52
    %s60 = scalar_lea.vmem [#allocation1], 32
    %61 = vst [vmem:[%s60] ss:$4 sm:$0xff] %v53
    %v62 = vld.sshfl [vmem:[#allocation1] sm:$0xff pattern:$0x73625140]
    %v63 = vld.sshfl [vmem:[#allocation1 + $0x8] sm:$0xff pattern:$0x73625140]
    %v64 = vld.sshfl [vmem:[#allocation1 + $0x10] sm:$0xff pattern:$0x73625140]
    %v65 = vld.sshfl [vmem:[#allocation1 + $0x18] sm:$0xff pattern:$0x73625140]
    %v66 = vld.sshfl [vmem:[#allocation1 + $0x20] sm:$0xff pattern:$0x73625140]
    %v67 = vld.sshfl [vmem:[#allocation1 + $0x28] sm:$0xff pattern:$0x73625140]
    %v68 = vld.sshfl [vmem:[#allocation1 + $0x30] sm:$0xff pattern:$0x73625140]
    %v69 = vld.sshfl [vmem:[#allocation1 + $0x38] sm:$0xff pattern:$0x73625140]
    %78 = vst [vmem:[#allocation1] ss:$4 sm:$0xff] %v52
    %s79 = scalar_lea.vmem [#allocation1], 32
    %80 = vst [vmem:[%s79] ss:$4 sm:$0xff] %v53
    %v81 = vld.sshfl [vmem:[#allocation1] sm:$0xff pattern:$0x73625140]
    %v82 = vld.sshfl [vmem:[#allocation1 + $0x8] sm:$0xff pattern:$0x73625140]
    %v83 = vld.sshfl [vmem:[#allocation1 + $0x10] sm:$0xff pattern:$0x73625140]
    %v84 = vld.sshfl [vmem:[#allocation1 + $0x18] sm:$0xff pattern:$0x73625140]
    %v85 = vld.sshfl [vmem:[#allocation1 + $0x20] sm:$0xff pattern:$0x73625140]
    %v86 = vld.sshfl [vmem:[#allocation1 + $0x28] sm:$0xff pattern:$0x73625140]
    %v87 = vld.sshfl [vmem:[#allocation1 + $0x30] sm:$0xff pattern:$0x73625140]
    %v88 = vld.sshfl [vmem:[#allocation1 + $0x38] sm:$0xff pattern:$0x73625140]
    %97 = vmatpush.xpose.msra.mxu0 0.0
    %98 = vmatpush.xpose.msra.mxu0 0.0
    %99 = vmatpush.xpose.msra.mxu0 0.0
    %100 = vmatpush.xpose.msra.mxu0 0.0
    %101 = vmatpush.xpose.msra.mxu0 0.0
    %102 = vmatpush.xpose.msra.mxu0 0.0
    %103 = vmatpush.xpose.msra.mxu0 0.0
    %104 = vmatpush.xpose.msra.mxu0 0.0
    %105 = vmatpush.xpose.msra.mxu0 0.0
    %106 = vmatpush.xpose.msra.mxu0 0.0
    %107 = vmatpush.xpose.msra.mxu0 0.0
    %108 = vmatpush.xpose.msra.mxu0 0.0
    %109 = vmatpush.xpose.msra.mxu0 0.0
    %110 = vmatpush.xpose.msra.mxu0 0.0
    %111 = vmatpush.xpose.msra.mxu0 0.0
    %112 = vmatpush.xpose.msra.mxu0 %v81
    %113 = vmatmul.f32.gmra.mxu0 %v62
    %v114 = vpop.f32.mrf.mxu0
    %v115 = vadd.f32 0.0, %v114
    %116 = vdwg.mxu0
    %117 = vmatpush.xpose.msra.mxu0 0.0
    %118 = vmatpush.xpose.msra.mxu0 0.0
    %119 = vmatpush.xpose.msra.mxu0 0.0
    %120 = vmatpush.xpose.msra.mxu0 0.0
    %121 = vmatpush.xpose.msra.mxu0 0.0
    %122 = vmatpush.xpose.msra.mxu0 0.0
    %123 = vmatpush.xpose.msra.mxu0 0.0
    %124 = vmatpush.xpose.msra.mxu0 0.0
    %125 = vmatpush.xpose.msra.mxu0 0.0
    %126 = vmatpush.xpose.msra.mxu0 0.0
    %127 = vmatpush.xpose.msra.mxu0 0.0
    %128 = vmatpush.xpose.msra.mxu0 0.0
    %129 = vmatpush.xpose.msra.mxu0 0.0
    %130 = vmatpush.xpose.msra.mxu0 0.0
    %131 = vmatpush.xpose.msra.mxu0 0.0
    %132 = vmatpush.xpose.msra.mxu0 %v82
    %133 = vmatmul.f32.gmra.mxu0 %v63
    %v134 = vpop.f32.mrf.mxu0
    %v135 = vadd.f32 %v115, %v134
    %136 = vdwg.mxu0
    %137 = vmatpush.xpose.msra.mxu0 0.0
    %138 = vmatpush.xpose.msra.mxu0 0.0
    %139 = vmatpush.xpose.msra.mxu0 0.0
    %140 = vmatpush.xpose.msra.mxu0 0.0
    %141 = vmatpush.xpose.msra.mxu0 0.0
    %142 = vmatpush.xpose.msra.mxu0 0.0
    %143 = vmatpush.xpose.msra.mxu0 0.0
    %144 = vmatpush.xpose.msra.mxu0 0.0
    %145 = vmatpush.xpose.msra.mxu0 0.0
    %146 = vmatpush.xpose.msra.mxu0 0.0
    %147 = vmatpush.xpose.msra.mxu0 0.0
    %148 = vmatpush.xpose.msra.mxu0 0.0
    %149 = vmatpush.xpose.msra.mxu0 0.0
    %150 = vmatpush.xpose.msra.mxu0 0.0
    %151 = vmatpush.xpose.msra.mxu0 0.0
    %152 = vmatpush.xpose.msra.mxu0 %v83
    %153 = vmatmul.f32.gmra.mxu0 %v64
    %v154 = vpop.f32.mrf.mxu0
    %v155 = vadd.f32 %v135, %v154
    %156 = vdwg.mxu0
    %157 = vmatpush.xpose.msra.mxu0 0.0
    %158 = vmatpush.xpose.msra.mxu0 0.0
    %159 = vmatpush.xpose.msra.mxu0 0.0
    %160 = vmatpush.xpose.msra.mxu0 0.0
    %161 = vmatpush.xpose.msra.mxu0 0.0
    %162 = vmatpush.xpose.msra.mxu0 0.0
    %163 = vmatpush.xpose.msra.mxu0 0.0
    %164 = vmatpush.xpose.msra.mxu0 0.0
    %165 = vmatpush.xpose.msra.mxu0 0.0
    %166 = vmatpush.xpose.msra.mxu0 0.0
    %167 = vmatpush.xpose.msra.mxu0 0.0
    %168 = vmatpush.xpose.msra.mxu0 0.0
    %169 = vmatpush.xpose.msra.mxu0 0.0
    %170 = vmatpush.xpose.msra.mxu0 0.0
    %171 = vmatpush.xpose.msra.mxu0 0.0
    %172 = vmatpush.xpose.msra.mxu0 %v84
    %173 = vmatmul.f32.gmra.mxu0 %v65
    %v174 = vpop.f32.mrf.mxu0
    %v175 = vadd.f32 %v155, %v174
    %176 = vdwg.mxu0
    %177 = vmatpush.xpose.msra.mxu0 0.0
    %178 = vmatpush.xpose.msra.mxu0 0.0
    %179 = vmatpush.xpose.msra.mxu0 0.0
    %180 = vmatpush.xpose.msra.mxu0 0.0
    %181 = vmatpush.xpose.msra.mxu0 0.0
    %182 = vmatpush.xpose.msra.mxu0 0.0
    %183 = vmatpush.xpose.msra.mxu0 0.0
    %184 = vmatpush.xpose.msra.mxu0 0.0
    %185 = vmatpush.xpose.msra.mxu0 0.0
    %186 = vmatpush.xpose.msra.mxu0 0.0
    %187 = vmatpush.xpose.msra.mxu0 0.0
    %188 = vmatpush.xpose.msra.mxu0 0.0
    %189 = vmatpush.xpose.msra.mxu0 0.0
    %190 = vmatpush.xpose.msra.mxu0 0.0
    %191 = vmatpush.xpose.msra.mxu0 0.0
    %192 = vmatpush.xpose.msra.mxu0 %v85
    %193 = vmatmul.f32.gmra.mxu0 %v66
    %v194 = vpop.f32.mrf.mxu0
    %v195 = vadd.f32 %v175, %v194
    %196 = vdwg.mxu0
    %197 = vmatpush.xpose.msra.mxu0 0.0
    %198 = vmatpush.xpose.msra.mxu0 0.0
    %199 = vmatpush.xpose.msra.mxu0 0.0
    %200 = vmatpush.xpose.msra.mxu0 0.0
    %201 = vmatpush.xpose.msra.mxu0 0.0
    %202 = vmatpush.xpose.msra.mxu0 0.0
    %203 = vmatpush.xpose.msra.mxu0 0.0
    %204 = vmatpush.xpose.msra.mxu0 0.0
    %205 = vmatpush.xpose.msra.mxu0 0.0
    %206 = vmatpush.xpose.msra.mxu0 0.0
    %207 = vmatpush.xpose.msra.mxu0 0.0
    %208 = vmatpush.xpose.msra.mxu0 0.0
    %209 = vmatpush.xpose.msra.mxu0 0.0
    %210 = vmatpush.xpose.msra.mxu0 0.0
    %211 = vmatpush.xpose.msra.mxu0 0.0
    %212 = vmatpush.xpose.msra.mxu0 %v86
    %213 = vmatmul.f32.gmra.mxu0 %v67
    %v214 = vpop.f32.mrf.mxu0
    %v215 = vadd.f32 %v195, %v214
    %216 = vdwg.mxu0
    %217 = vmatpush.xpose.msra.mxu0 0.0
    %218 = vmatpush.xpose.msra.mxu0 0.0
    %219 = vmatpush.xpose.msra.mxu0 0.0
    %220 = vmatpush.xpose.msra.mxu0 0.0
    %221 = vmatpush.xpose.msra.mxu0 0.0
    %222 = vmatpush.xpose.msra.mxu0 0.0
    %223 = vmatpush.xpose.msra.mxu0 0.0
    %224 = vmatpush.xpose.msra.mxu0 0.0
    %225 = vmatpush.xpose.msra.mxu0 0.0
    %226 = vmatpush.xpose.msra.mxu0 0.0
    %227 = vmatpush.xpose.msra.mxu0 0.0
    %228 = vmatpush.xpose.msra.mxu0 0.0
    %229 = vmatpush.xpose.msra.mxu0 0.0
    %230 = vmatpush.xpose.msra.mxu0 0.0
    %231 = vmatpush.xpose.msra.mxu0 0.0
    %232 = vmatpush.xpose.msra.mxu0 %v87
    %233 = vmatmul.f32.gmra.mxu0 %v68
    %v234 = vpop.f32.mrf.mxu0
    %v235 = vadd.f32 %v215, %v234
    %236 = vdwg.mxu0
    %237 = vmatpush.xpose.msra.mxu0 0.0
    %238 = vmatpush.xpose.msra.mxu0 0.0
    %239 = vmatpush.xpose.msra.mxu0 0.0
    %240 = vmatpush.xpose.msra.mxu0 0.0
    %241 = vmatpush.xpose.msra.mxu0 0.0
    %242 = vmatpush.xpose.msra.mxu0 0.0
    %243 = vmatpush.xpose.msra.mxu0 0.0
    %244 = vmatpush.xpose.msra.mxu0 0.0
    %245 = vmatpush.xpose.msra.mxu0 0.0
    %246 = vmatpush.xpose.msra.mxu0 0.0
    %247 = vmatpush.xpose.msra.mxu0 0.0
    %248 = vmatpush.xpose.msra.mxu0 0.0
    %249 = vmatpush.xpose.msra.mxu0 0.0
    %250 = vmatpush.xpose.msra.mxu0 0.0
    %251 = vmatpush.xpose.msra.mxu0 0.0
    %252 = vmatpush.xpose.msra.mxu0 %v88
    %253 = vmatmul.f32.gmra.mxu0 %v69
    %v254 = vpop.f32.mrf.mxu0
    %v255 = vadd.f32 %v235, %v254
    %256 = vdwg.mxu0
    %v257 = vadd.f32 %v56, %v255
    %vm258 = vcmask 9216
    %259 = vst.msk [vmem:[#allocation7] sm:$0x3] %vm258, %v257
    %v260 = vld [vmem:[#allocation8] sm:$0x3]
    %263 = vst [vmem:[#allocation1] ss:$4 sm:$0xff] %v54
    %s264 = scalar_lea.vmem [#allocation1], 32
    %265 = vst [vmem:[%s264] ss:$4 sm:$0xff] %v55
    %v266 = vld.sshfl [vmem:[#allocation1] sm:$0xff pattern:$0x73625140]
    %v267 = vld.sshfl [vmem:[#allocation1 + $0x8] sm:$0xff pattern:$0x73625140]
    %v268 = vld.sshfl [vmem:[#allocation1 + $0x10] sm:$0xff pattern:$0x73625140]
    %v269 = vld.sshfl [vmem:[#allocation1 + $0x18] sm:$0xff pattern:$0x73625140]
    %v270 = vld.sshfl [vmem:[#allocation1 + $0x20] sm:$0xff pattern:$0x73625140]
    %v271 = vld.sshfl [vmem:[#allocation1 + $0x28] sm:$0xff pattern:$0x73625140]
    %v272 = vld.sshfl [vmem:[#allocation1 + $0x30] sm:$0xff pattern:$0x73625140]
    %v273 = vld.sshfl [vmem:[#allocation1 + $0x38] sm:$0xff pattern:$0x73625140]
    %282 = vst [vmem:[#allocation1] ss:$4 sm:$0xff] %v54
    %s283 = scalar_lea.vmem [#allocation1], 32
    %284 = vst [vmem:[%s283] ss:$4 sm:$0xff] %v55
    %v285 = vld.sshfl [vmem:[#allocation1] sm:$0xff pattern:$0x73625140]
    %v286 = vld.sshfl [vmem:[#allocation1 + $0x8] sm:$0xff pattern:$0x73625140]
    %v287 = vld.sshfl [vmem:[#allocation1 + $0x10] sm:$0xff pattern:$0x73625140]
    %v288 = vld.sshfl [vmem:[#allocation1 + $0x18] sm:$0xff pattern:$0x73625140]
    %v289 = vld.sshfl [vmem:[#allocation1 + $0x20] sm:$0xff pattern:$0x73625140]
    %v290 = vld.sshfl [vmem:[#allocation1 + $0x28] sm:$0xff pattern:$0x73625140]
    %v291 = vld.sshfl [vmem:[#allocation1 + $0x30] sm:$0xff pattern:$0x73625140]
    %v292 = vld.sshfl [vmem:[#allocation1 + $0x38] sm:$0xff pattern:$0x73625140]
    %301 = vmatpush.xpose.msra.mxu0 0.0
    %302 = vmatpush.xpose.msra.mxu0 0.0
    %303 = vmatpush.xpose.msra.mxu0 0.0
    %304 = vmatpush.xpose.msra.mxu0 0.0
    %305 = vmatpush.xpose.msra.mxu0 0.0
    %306 = vmatpush.xpose.msra.mxu0 0.0
    %307 = vmatpush.xpose.msra.mxu0 0.0
    %308 = vmatpush.xpose.msra.mxu0 0.0
    %309 = vmatpush.xpose.msra.mxu0 0.0
    %310 = vmatpush.xpose.msra.mxu0 0.0
    %311 = vmatpush.xpose.msra.mxu0 0.0
    %312 = vmatpush.xpose.msra.mxu0 0.0
    %313 = vmatpush.xpose.msra.mxu0 0.0
    %314 = vmatpush.xpose.msra.mxu0 0.0
    %315 = vmatpush.xpose.msra.mxu0 0.0
    %316 = vmatpush.xpose.msra.mxu0 %v285
    %317 = vmatmul.f32.gmra.mxu0 %v266
    %v318 = vpop.f32.mrf.mxu0
    %v319 = vadd.f32 0.0, %v318
    %320 = vdwg.mxu0
    %321 = vmatpush.xpose.msra.mxu0 0.0
    %322 = vmatpush.xpose.msra.mxu0 0.0
    %323 = vmatpush.xpose.msra.mxu0 0.0
    %324 = vmatpush.xpose.msra.mxu0 0.0
    %325 = vmatpush.xpose.msra.mxu0 0.0
    %326 = vmatpush.xpose.msra.mxu0 0.0
    %327 = vmatpush.xpose.msra.mxu0 0.0
    %328 = vmatpush.xpose.msra.mxu0 0.0
    %329 = vmatpush.xpose.msra.mxu0 0.0
    %330 = vmatpush.xpose.msra.mxu0 0.0
    %331 = vmatpush.xpose.msra.mxu0 0.0
    %332 = vmatpush.xpose.msra.mxu0 0.0
    %333 = vmatpush.xpose.msra.mxu0 0.0
    %334 = vmatpush.xpose.msra.mxu0 0.0
    %335 = vmatpush.xpose.msra.mxu0 0.0
    %336 = vmatpush.xpose.msra.mxu0 %v286
    %337 = vmatmul.f32.gmra.mxu0 %v267
    %v338 = vpop.f32.mrf.mxu0
    %v339 = vadd.f32 %v319, %v338
    %340 = vdwg.mxu0
    %341 = vmatpush.xpose.msra.mxu0 0.0
    %342 = vmatpush.xpose.msra.mxu0 0.0
    %343 = vmatpush.xpose.msra.mxu0 0.0
    %344 = vmatpush.xpose.msra.mxu0 0.0
    %345 = vmatpush.xpose.msra.mxu0 0.0
    %346 = vmatpush.xpose.msra.mxu0 0.0
    %347 = vmatpush.xpose.msra.mxu0 0.0
    %348 = vmatpush.xpose.msra.mxu0 0.0
    %349 = vmatpush.xpose.msra.mxu0 0.0
    %350 = vmatpush.xpose.msra.mxu0 0.0
    %351 = vmatpush.xpose.msra.mxu0 0.0
    %352 = vmatpush.xpose.msra.mxu0 0.0
    %353 = vmatpush.xpose.msra.mxu0 0.0
    %354 = vmatpush.xpose.msra.mxu0 0.0
    %355 = vmatpush.xpose.msra.mxu0 0.0
    %356 = vmatpush.xpose.msra.mxu0 %v287
    %357 = vmatmul.f32.gmra.mxu0 %v268
    %v358 = vpop.f32.mrf.mxu0
    %v359 = vadd.f32 %v339, %v358
    %360 = vdwg.mxu0
    %361 = vmatpush.xpose.msra.mxu0 0.0
    %362 = vmatpush.xpose.msra.mxu0 0.0
    %363 = vmatpush.xpose.msra.mxu0 0.0
    %364 = vmatpush.xpose.msra.mxu0 0.0
    %365 = vmatpush.xpose.msra.mxu0 0.0
    %366 = vmatpush.xpose.msra.mxu0 0.0
    %367 = vmatpush.xpose.msra.mxu0 0.0
    %368 = vmatpush.xpose.msra.mxu0 0.0
    %369 = vmatpush.xpose.msra.mxu0 0.0
    %370 = vmatpush.xpose.msra.mxu0 0.0
    %371 = vmatpush.xpose.msra.mxu0 0.0
    %372 = vmatpush.xpose.msra.mxu0 0.0
    %373 = vmatpush.xpose.msra.mxu0 0.0
    %374 = vmatpush.xpose.msra.mxu0 0.0
    %375 = vmatpush.xpose.msra.mxu0 0.0
    %376 = vmatpush.xpose.msra.mxu0 %v288
    %377 = vmatmul.f32.gmra.mxu0 %v269
    %v378 = vpop.f32.mrf.mxu0
    %v379 = vadd.f32 %v359, %v378
    %380 = vdwg.mxu0
    %381 = vmatpush.xpose.msra.mxu0 0.0
    %382 = vmatpush.xpose.msra.mxu0 0.0
    %383 = vmatpush.xpose.msra.mxu0 0.0
    %384 = vmatpush.xpose.msra.mxu0 0.0
    %385 = vmatpush.xpose.msra.mxu0 0.0
    %386 = vmatpush.xpose.msra.mxu0 0.0
    %387 = vmatpush.xpose.msra.mxu0 0.0
    %388 = vmatpush.xpose.msra.mxu0 0.0
    %389 = vmatpush.xpose.msra.mxu0 0.0
    %390 = vmatpush.xpose.msra.mxu0 0.0
    %391 = vmatpush.xpose.msra.mxu0 0.0
    %392 = vmatpush.xpose.msra.mxu0 0.0
    %393 = vmatpush.xpose.msra.mxu0 0.0
    %394 = vmatpush.xpose.msra.mxu0 0.0
    %395 = vmatpush.xpose.msra.mxu0 0.0
    %396 = vmatpush.xpose.msra.mxu0 %v289
    %397 = vmatmul.f32.gmra.mxu0 %v270
    %v398 = vpop.f32.mrf.mxu0
    %v399 = vadd.f32 %v379, %v398
    %400 = vdwg.mxu0
    %401 = vmatpush.xpose.msra.mxu0 0.0
    %402 = vmatpush.xpose.msra.mxu0 0.0
    %403 = vmatpush.xpose.msra.mxu0 0.0
    %404 = vmatpush.xpose.msra.mxu0 0.0
    %405 = vmatpush.xpose.msra.mxu0 0.0
    %406 = vmatpush.xpose.msra.mxu0 0.0
    %407 = vmatpush.xpose.msra.mxu0 0.0
    %408 = vmatpush.xpose.msra.mxu0 0.0
    %409 = vmatpush.xpose.msra.mxu0 0.0
    %410 = vmatpush.xpose.msra.mxu0 0.0
    %411 = vmatpush.xpose.msra.mxu0 0.0
    %412 = vmatpush.xpose.msra.mxu0 0.0
    %413 = vmatpush.xpose.msra.mxu0 0.0
    %414 = vmatpush.xpose.msra.mxu0 0.0
    %415 = vmatpush.xpose.msra.mxu0 0.0
    %416 = vmatpush.xpose.msra.mxu0 %v290
    %417 = vmatmul.f32.gmra.mxu0 %v271
    %v418 = vpop.f32.mrf.mxu0
    %v419 = vadd.f32 %v399, %v418
    %420 = vdwg.mxu0
    %421 = vmatpush.xpose.msra.mxu0 0.0
    %422 = vmatpush.xpose.msra.mxu0 0.0
    %423 = vmatpush.xpose.msra.mxu0 0.0
    %424 = vmatpush.xpose.msra.mxu0 0.0
    %425 = vmatpush.xpose.msra.mxu0 0.0
    %426 = vmatpush.xpose.msra.mxu0 0.0
    %427 = vmatpush.xpose.msra.mxu0 0.0
    %428 = vmatpush.xpose.msra.mxu0 0.0
    %429 = vmatpush.xpose.msra.mxu0 0.0
    %430 = vmatpush.xpose.msra.mxu0 0.0
    %431 = vmatpush.xpose.msra.mxu0 0.0
    %432 = vmatpush.xpose.msra.mxu0 0.0
    %433 = vmatpush.xpose.msra.mxu0 0.0
    %434 = vmatpush.xpose.msra.mxu0 0.0
    %435 = vmatpush.xpose.msra.mxu0 0.0
    %436 = vmatpush.xpose.msra.mxu0 %v291
    %437 = vmatmul.f32.gmra.mxu0 %v272
    %v438 = vpop.f32.mrf.mxu0
    %v439 = vadd.f32 %v419, %v438
    %440 = vdwg.mxu0
    %441 = vmatpush.xpose.msra.mxu0 0.0
    %442 = vmatpush.xpose.msra.mxu0 0.0
    %443 = vmatpush.xpose.msra.mxu0 0.0
    %444 = vmatpush.xpose.msra.mxu0 0.0
    %445 = vmatpush.xpose.msra.mxu0 0.0
    %446 = vmatpush.xpose.msra.mxu0 0.0
    %447 = vmatpush.xpose.msra.mxu0 0.0
    %448 = vmatpush.xpose.msra.mxu0 0.0
    %449 = vmatpush.xpose.msra.mxu0 0.0
    %450 = vmatpush.xpose.msra.mxu0 0.0
    %451 = vmatpush.xpose.msra.mxu0 0.0
    %452 = vmatpush.xpose.msra.mxu0 0.0
    %453 = vmatpush.xpose.msra.mxu0 0.0
    %454 = vmatpush.xpose.msra.mxu0 0.0
    %455 = vmatpush.xpose.msra.mxu0 0.0
    %456 = vmatpush.xpose.msra.mxu0 %v292
    %457 = vmatmul.f32.gmra.mxu0 %v273
    %v458 = vpop.f32.mrf.mxu0
    %v459 = vadd.f32 %v439, %v458
    %460 = vdwg.mxu0
    %v461 = vadd.f32 %v260, %v459
    %462 = vst.msk [vmem:[#allocation8] sm:$0x3] %vm258, %v461
    %v463 = vld [vmem:[#allocation10] sm:$0x3]
    %464 = vst [vmem:[#allocation1] ss:$4 sm:$0xff] %v52
    %s465 = scalar_lea.vmem [#allocation1], 32
    %466 = vst [vmem:[%s465] ss:$4 sm:$0xff] %v53
    %v467 = vld.sshfl [vmem:[#allocation1] sm:$0xff pattern:$0x73625140]
    %v468 = vld.sshfl [vmem:[#allocation1 + $0x8] sm:$0xff pattern:$0x73625140]
    %v469 = vld.sshfl [vmem:[#allocation1 + $0x10] sm:$0xff pattern:$0x73625140]
    %v470 = vld.sshfl [vmem:[#allocation1 + $0x18] sm:$0xff pattern:$0x73625140]
    %v471 = vld.sshfl [vmem:[#allocation1 + $0x20] sm:$0xff pattern:$0x73625140]
    %v472 = vld.sshfl [vmem:[#allocation1 + $0x28] sm:$0xff pattern:$0x73625140]
    %v473 = vld.sshfl [vmem:[#allocation1 + $0x30] sm:$0xff pattern:$0x73625140]
    %v474 = vld.sshfl [vmem:[#allocation1 + $0x38] sm:$0xff pattern:$0x73625140]
    %483 = vst [vmem:[#allocation1] ss:$4 sm:$0xff] %v54
    %s484 = scalar_lea.vmem [#allocation1], 32
    %485 = vst [vmem:[%s484] ss:$4 sm:$0xff] %v55
    %v486 = vld.sshfl [vmem:[#allocation1] sm:$0xff pattern:$0x73625140]
    %v487 = vld.sshfl [vmem:[#allocation1 + $0x8] sm:$0xff pattern:$0x73625140]
    %v488 = vld.sshfl [vmem:[#allocation1 + $0x10] sm:$0xff pattern:$0x73625140]
    %v489 = vld.sshfl [vmem:[#allocation1 + $0x18] sm:$0xff pattern:$0x73625140]
    %v490 = vld.sshfl [vmem:[#allocation1 + $0x20] sm:$0xff pattern:$0x73625140]
    %v491 = vld.sshfl [vmem:[#allocation1 + $0x28] sm:$0xff pattern:$0x73625140]
    %v492 = vld.sshfl [vmem:[#allocation1 + $0x30] sm:$0xff pattern:$0x73625140]
    %v493 = vld.sshfl [vmem:[#allocation1 + $0x38] sm:$0xff pattern:$0x73625140]
    %502 = vmatpush.xpose.msra.mxu0 0.0
    %503 = vmatpush.xpose.msra.mxu0 0.0
    %504 = vmatpush.xpose.msra.mxu0 0.0
    %505 = vmatpush.xpose.msra.mxu0 0.0
    %506 = vmatpush.xpose.msra.mxu0 0.0
    %507 = vmatpush.xpose.msra.mxu0 0.0
    %508 = vmatpush.xpose.msra.mxu0 0.0
    %509 = vmatpush.xpose.msra.mxu0 0.0
    %510 = vmatpush.xpose.msra.mxu0 0.0
    %511 = vmatpush.xpose.msra.mxu0 0.0
    %512 = vmatpush.xpose.msra.mxu0 0.0
    %513 = vmatpush.xpose.msra.mxu0 0.0
    %514 = vmatpush.xpose.msra.mxu0 0.0
    %515 = vmatpush.xpose.msra.mxu0 0.0
    %516 = vmatpush.xpose.msra.mxu0 0.0
    %517 = vmatpush.xpose.msra.mxu0 %v486
    %518 = vmatmul.f32.gmra.mxu0 %v467
    %v519 = vpop.f32.mrf.mxu0
    %v520 = vadd.f32 0.0, %v519
    %521 = vdwg.mxu0
    %522 = vmatpush.xpose.msra.mxu0 0.0
    %523 = vmatpush.xpose.msra.mxu0 0.0
    %524 = vmatpush.xpose.msra.mxu0 0.0
    %525 = vmatpush.xpose.msra.mxu0 0.0
    %526 = vmatpush.xpose.msra.mxu0 0.0
    %527 = vmatpush.xpose.msra.mxu0 0.0
    %528 = vmatpush.xpose.msra.mxu0 0.0
    %529 = vmatpush.xpose.msra.mxu0 0.0
    %530 = vmatpush.xpose.msra.mxu0 0.0
    %531 = vmatpush.xpose.msra.mxu0 0.0
    %532 = vmatpush.xpose.msra.mxu0 0.0
    %533 = vmatpush.xpose.msra.mxu0 0.0
    %534 = vmatpush.xpose.msra.mxu0 0.0
    %535 = vmatpush.xpose.msra.mxu0 0.0
    %536 = vmatpush.xpose.msra.mxu0 0.0
    %537 = vmatpush.xpose.msra.mxu0 %v487
    %538 = vmatmul.f32.gmra.mxu0 %v468
    %v539 = vpop.f32.mrf.mxu0
    %v540 = vadd.f32 %v520, %v539
    %541 = vdwg.mxu0
    %542 = vmatpush.xpose.msra.mxu0 0.0
    %543 = vmatpush.xpose.msra.mxu0 0.0
    %544 = vmatpush.xpose.msra.mxu0 0.0
    %545 = vmatpush.xpose.msra.mxu0 0.0
    %546 = vmatpush.xpose.msra.mxu0 0.0
    %547 = vmatpush.xpose.msra.mxu0 0.0
    %548 = vmatpush.xpose.msra.mxu0 0.0
    %549 = vmatpush.xpose.msra.mxu0 0.0
    %550 = vmatpush.xpose.msra.mxu0 0.0
    %551 = vmatpush.xpose.msra.mxu0 0.0
    %552 = vmatpush.xpose.msra.mxu0 0.0
    %553 = vmatpush.xpose.msra.mxu0 0.0
    %554 = vmatpush.xpose.msra.mxu0 0.0
    %555 = vmatpush.xpose.msra.mxu0 0.0
    %556 = vmatpush.xpose.msra.mxu0 0.0
    %557 = vmatpush.xpose.msra.mxu0 %v488
    %558 = vmatmul.f32.gmra.mxu0 %v469
    %v559 = vpop.f32.mrf.mxu0
    %v560 = vadd.f32 %v540, %v559
    %561 = vdwg.mxu0
    %562 = vmatpush.xpose.msra.mxu0 0.0
    %563 = vmatpush.xpose.msra.mxu0 0.0
    %564 = vmatpush.xpose.msra.mxu0 0.0
    %565 = vmatpush.xpose.msra.mxu0 0.0
    %566 = vmatpush.xpose.msra.mxu0 0.0
    %567 = vmatpush.xpose.msra.mxu0 0.0
    %568 = vmatpush.xpose.msra.mxu0 0.0
    %569 = vmatpush.xpose.msra.mxu0 0.0
    %570 = vmatpush.xpose.msra.mxu0 0.0
    %571 = vmatpush.xpose.msra.mxu0 0.0
    %572 = vmatpush.xpose.msra.mxu0 0.0
    %573 = vmatpush.xpose.msra.mxu0 0.0
    %574 = vmatpush.xpose.msra.mxu0 0.0
    %575 = vmatpush.xpose.msra.mxu0 0.0
    %576 = vmatpush.xpose.msra.mxu0 0.0
    %577 = vmatpush.xpose.msra.mxu0 %v489
    %578 = vmatmul.f32.gmra.mxu0 %v470
    %v579 = vpop.f32.mrf.mxu0
    %v580 = vadd.f32 %v560, %v579
    %581 = vdwg.mxu0
    %582 = vmatpush.xpose.msra.mxu0 0.0
    %583 = vmatpush.xpose.msra.mxu0 0.0
    %584 = vmatpush.xpose.msra.mxu0 0.0
    %585 = vmatpush.xpose.msra.mxu0 0.0
    %586 = vmatpush.xpose.msra.mxu0 0.0
    %587 = vmatpush.xpose.msra.mxu0 0.0
    %588 = vmatpush.xpose.msra.mxu0 0.0
    %589 = vmatpush.xpose.msra.mxu0 0.0
    %590 = vmatpush.xpose.msra.mxu0 0.0
    %591 = vmatpush.xpose.msra.mxu0 0.0
    %592 = vmatpush.xpose.msra.mxu0 0.0
    %593 = vmatpush.xpose.msra.mxu0 0.0
    %594 = vmatpush.xpose.msra.mxu0 0.0
    %595 = vmatpush.xpose.msra.mxu0 0.0
    %596 = vmatpush.xpose.msra.mxu0 0.0
    %597 = vmatpush.xpose.msra.mxu0 %v490
    %598 = vmatmul.f32.gmra.mxu0 %v471
    %v599 = vpop.f32.mrf.mxu0
    %v600 = vadd.f32 %v580, %v599
    %601 = vdwg.mxu0
    %602 = vmatpush.xpose.msra.mxu0 0.0
    %603 = vmatpush.xpose.msra.mxu0 0.0
    %604 = vmatpush.xpose.msra.mxu0 0.0
    %605 = vmatpush.xpose.msra.mxu0 0.0
    %606 = vmatpush.xpose.msra.mxu0 0.0
    %607 = vmatpush.xpose.msra.mxu0 0.0
    %608 = vmatpush.xpose.msra.mxu0 0.0
    %609 = vmatpush.xpose.msra.mxu0 0.0
    %610 = vmatpush.xpose.msra.mxu0 0.0
    %611 = vmatpush.xpose.msra.mxu0 0.0
    %612 = vmatpush.xpose.msra.mxu0 0.0
    %613 = vmatpush.xpose.msra.mxu0 0.0
    %614 = vmatpush.xpose.msra.mxu0 0.0
    %615 = vmatpush.xpose.msra.mxu0 0.0
    %616 = vmatpush.xpose.msra.mxu0 0.0
    %617 = vmatpush.xpose.msra.mxu0 %v491
    %618 = vmatmul.f32.gmra.mxu0 %v472
    %v619 = vpop.f32.mrf.mxu0
    %v620 = vadd.f32 %v600, %v619
    %621 = vdwg.mxu0
    %622 = vmatpush.xpose.msra.mxu0 0.0
    %623 = vmatpush.xpose.msra.mxu0 0.0
    %624 = vmatpush.xpose.msra.mxu0 0.0
    %625 = vmatpush.xpose.msra.mxu0 0.0
    %626 = vmatpush.xpose.msra.mxu0 0.0
    %627 = vmatpush.xpose.msra.mxu0 0.0
    %628 = vmatpush.xpose.msra.mxu0 0.0
    %629 = vmatpush.xpose.msra.mxu0 0.0
    %630 = vmatpush.xpose.msra.mxu0 0.0
    %631 = vmatpush.xpose.msra.mxu0 0.0
    %632 = vmatpush.xpose.msra.mxu0 0.0
    %633 = vmatpush.xpose.msra.mxu0 0.0
    %634 = vmatpush.xpose.msra.mxu0 0.0
    %635 = vmatpush.xpose.msra.mxu0 0.0
    %636 = vmatpush.xpose.msra.mxu0 0.0
    %637 = vmatpush.xpose.msra.mxu0 %v492
    %638 = vmatmul.f32.gmra.mxu0 %v473
    %v639 = vpop.f32.mrf.mxu0
    %v640 = vadd.f32 %v620, %v639
    %641 = vdwg.mxu0
    %642 = vmatpush.xpose.msra.mxu0 0.0
    %643 = vmatpush.xpose.msra.mxu0 0.0
    %644 = vmatpush.xpose.msra.mxu0 0.0
    %645 = vmatpush.xpose.msra.mxu0 0.0
    %646 = vmatpush.xpose.msra.mxu0 0.0
    %647 = vmatpush.xpose.msra.mxu0 0.0
    %648 = vmatpush.xpose.msra.mxu0 0.0
    %649 = vmatpush.xpose.msra.mxu0 0.0
    %650 = vmatpush.xpose.msra.mxu0 0.0
    %651 = vmatpush.xpose.msra.mxu0 0.0
    %652 = vmatpush.xpose.msra.mxu0 0.0
    %653 = vmatpush.xpose.msra.mxu0 0.0
    %654 = vmatpush.xpose.msra.mxu0 0.0
    %655 = vmatpush.xpose.msra.mxu0 0.0
    %656 = vmatpush.xpose.msra.mxu0 0.0
    %657 = vmatpush.xpose.msra.mxu0 %v493
    %658 = vmatmul.f32.gmra.mxu0 %v474
    %v659 = vpop.f32.mrf.mxu0
    %v660 = vadd.f32 %v640, %v659
    %661 = vdwg.mxu0
    %v662 = vadd.f32 %v463, %v660
    %663 = vst.msk [vmem:[#allocation10] sm:$0x3] %vm258, %v662
    // Predicated region
    $region22: #{tpu_custom_call.1} parent=1 // pred_check
      _
    $region23: #{tpu_custom_call.1} parent=1 // pred_check_branch
      %665 = sbr.rel (0) target = $region25
    $region24: #{tpu_custom_call.1} parent=1 // pred_region
      %667 = vsyncadd [#allocation4], 0
      %s669 = sshll.u32 [#allocation7], 4
      %s670 = int_to_ptr.vmem [resolvable:$true] %s669
      %s671 = sshll.u32 %s2, 4
      %s672 = int_to_ptr.hbm [resolvable:$true] %s671
      %674 = dma.vmem_to_hbm [thread:$0]  %s670, 32, %s672, [#allocation4]
    $region25: #{tpu_custom_call.1} parent=1 // pred_fallthru
      _
    // Predicated region
    $region26: #{tpu_custom_call.1} parent=1 // pred_check
      _
    $region27: #{tpu_custom_call.1} parent=1 // pred_check_branch
      %676 = sbr.rel (0) target = $region29
    $region28: #{tpu_custom_call.1} parent=1 // pred_region
      %678 = vsyncadd [#allocation9], 0
      %s680 = sshll.u32 [#allocation8], 4
      %s681 = int_to_ptr.vmem [resolvable:$true] %s680
      %s682 = sshll.u32 %s3, 4
      %s683 = int_to_ptr.hbm [resolvable:$true] %s682
      %685 = dma.vmem_to_hbm [thread:$0]  %s681, 32, %s683, [#allocation9]
    $region29: #{tpu_custom_call.1} parent=1 // pred_fallthru
      _
    // Predicated region
    $region30: #{tpu_custom_call.1} parent=1 // pred_check
      _
    $region31: #{tpu_custom_call.1} parent=1 // pred_check_branch
      %687 = sbr.rel (0) target = $region33
    $region32: #{tpu_custom_call.1} parent=1 // pred_region
      %689 = vsyncadd [#allocation9], 0
      %s691 = sshll.u32 [#allocation10], 4
      %s692 = int_to_ptr.vmem [resolvable:$true] %s691
      %s693 = sshll.u32 %s4, 4
      %s694 = int_to_ptr.hbm [resolvable:$true] %s693
      %696 = dma.vmem_to_hbm [thread:$0]  %s692, 32, %s694, [#allocation9]
    $region33: #{tpu_custom_call.1} parent=1 // pred_fallthru
      _
    // Predicated region
    $region34: #{tpu_custom_call.1} parent=1 // pred_check
      _
    $region35: #{tpu_custom_call.1} parent=1 // pred_check_branch
      %698 = sbr.rel (0) target = $region37
    $region36: #{tpu_custom_call.1} parent=1 // pred_region
      %700 = dma.done [#allocation4], 32
    $region37: #{tpu_custom_call.1} parent=1 // pred_fallthru
      _
    // Predicated region
    $region38: #{tpu_custom_call.1} parent=1 // pred_check
      _
    $region39: #{tpu_custom_call.1} parent=1 // pred_check_branch
      %702 = sbr.rel (0) target = $region41
    $region40: #{tpu_custom_call.1} parent=1 // pred_region
      %704 = dma.done [#allocation9], 32
    $region41: #{tpu_custom_call.1} parent=1 // pred_fallthru
      _
    // Predicated region
    $region42: #{tpu_custom_call.1} parent=1 // pred_check
      _
    $region43: #{tpu_custom_call.1} parent=1 // pred_check_branch
      %706 = sbr.rel (0) target = $region45
    $region44: #{tpu_custom_call.1} parent=1 // pred_region
      %708 = dma.done [#allocation9], 32
    $region45: #{tpu_custom_call.1} parent=1 // pred_fallthru
      _
    %709 = vsyncpa [#allocation3], 1
    %710 = vsyncpa [#allocation6], 1
    %711 = vsyncpa [#allocation4], 1
    %712 = vsyncpa [#allocation9], 1

</llo_original>
